<compile_context>
chip_gen: v7x
topology: tpu7x:2x2x1
jax: 0.10.0
libtpu: 0.0.40
codegen_flags: <defaults>
</compile_context>

<pallas_src>
import functools

import jax
import jax.numpy as jnp
from jax import lax
from jax.experimental import pallas as pl
from jax.experimental.pallas import tpu as pltpu


def _l2_normalize_kernel(x_ref, out_ref):
    # Matches F.normalize(x, dim=1): x / max(||x||, 1e-12) == x * rsqrt(max(||x||^2, 1e-24)).
    x = x_ref[...].astype(jnp.float32)
    ss = jnp.sum(x * x, axis=1, keepdims=True)
    out_ref[...] = (x * lax.rsqrt(jnp.maximum(ss, 1e-24))).astype(out_ref.dtype)


def _ntxent_tile_kernel(rows_ref, partner_ref, cols_ref, out_ref, m_sc, l_sc,
                        *, inv_temp):
    j = pl.program_id(1)

    @pl.when(j == 0)
    def _init():
        m_sc[...] = jnp.full_like(m_sc, -jnp.inf)
        l_sc[...] = jnp.zeros_like(l_sc)

    # One MXU push per (row tile, column tile): contract last dims (QK^T path),
    # bf16 operands (when cosine) with f32 accumulation.
    s = lax.dot_general(
        rows_ref[...], cols_ref[...],
        (((1,), (1,)), ((), ())),
        preferred_element_type=jnp.float32,
    ) * inv_temp                                                     # [TM, TK] f32

    # Online (flash-style) logsumexp across column tiles.
    m_prev = m_sc[...]
    m_new = jnp.maximum(m_prev, jnp.max(s, axis=1, keepdims=True))   # [TM, 1]
    alpha = jnp.exp(m_prev - m_new)
    l_sc[...] = alpha * l_sc[...] + jnp.sum(jnp.exp(s - m_new), axis=1, keepdims=True)
    m_sc[...] = m_new

    @pl.when(j == pl.num_programs(1) - 1)
    def _finalize():
        lse = m_sc[...] + jnp.log(l_sc[...])                         # [TM, 1]
        # Positive logit for row r: <rep[r], rep[(r + B) mod 2B]> / T, computed
        # from the contiguous "partner" tile (no diagonal gather on the scores).
        rows = rows_ref[...].astype(jnp.float32)
        partner = partner_ref[...].astype(jnp.float32)
        pos = jnp.sum(rows * partner, axis=1, keepdims=True) * inv_temp
        out_ref[...] = lse - pos


def _largest_divisor_tile(total, candidates):
    for c in candidates:
        if c <= total and total % c == 0:
            return c
    return total


def ntxent_loss(z_i, z_j, *, temperature=0.5, use_cosine_similarity=True):
    """NT-Xent loss matching the PyTorch reference. z_i, z_j: [B, D] -> f32 scalar."""
    batch, dim = z_i.shape
    assert z_j.shape == (batch, dim)
    # TODO(synk): pad odd batch sizes instead of requiring a multiple of 8.
    assert batch % 8 == 0, "batch must be a multiple of 8 for this Pallas path"

    n_rows = 2 * batch
    rep = jnp.concatenate([z_i, z_j], axis=0).astype(jnp.float32)     # [2B, D]

    if use_cosine_similarity:
        # Normalize ONCE over the whole block; bf16 output feeds the MXU.
        norm_tile = _largest_divisor_tile(n_rows, (256, 128, 64, 32, 16, 8))
        rep_mm = pl.pallas_call(
            _l2_normalize_kernel,
            out_shape=jax.ShapeDtypeStruct((n_rows, dim), jnp.bfloat16),
            grid_spec=pltpu.PrefetchScalarGridSpec(
                num_scalar_prefetch=0,
                grid=(n_rows // norm_tile,),
                in_specs=[pl.BlockSpec((norm_tile, dim), lambda i: (i, 0))],
                out_specs=pl.BlockSpec((norm_tile, dim), lambda i: (i, 0)),
            ),
            compiler_params=pltpu.CompilerParams(
                dimension_semantics=("parallel",)),
        )(rep)
    else:
        # Raw dot products: keep f32 operands (inputs may have large magnitudes).
        rep_mm = rep

    elt = jnp.dtype(rep_mm.dtype).itemsize
    row_tile = _largest_divisor_tile(batch, (256, 128, 64, 32, 16, 8))
    col_tile = _largest_divisor_tile(n_rows, (512, 256, 128, 64, 32, 16, 8))
    n_row_tiles = n_rows // row_tile
    n_col_tiles = n_rows // col_tile
    half_tiles = batch // row_tile

    # VMEM budget from the actual working set: double-buffered rows/partner/cols
    # blocks + score-tile temporaries + (TM, 1) scratches (lane-padded) + headroom.
    vmem_bytes = (2 * (2 * row_tile + col_tile) * dim * elt
                  + 4 * row_tile * col_tile * 4
                  + 2 * row_tile * 128 * 4
                  + (4 << 20))
    vmem_bytes = int(min(max(vmem_bytes, 16 << 20), 96 << 20))

    kernel = functools.partial(_ntxent_tile_kernel,
                               inv_temp=float(1.0 / temperature))

    per_row = pl.pallas_call(
        kernel,
        out_shape=jax.ShapeDtypeStruct((n_rows, 1), jnp.float32),
        grid_spec=pltpu.PrefetchScalarGridSpec(
            num_scalar_prefetch=0,
            grid=(n_row_tiles, n_col_tiles),
            in_specs=[
                # Query rows of this tile.
                pl.BlockSpec((row_tile, dim), lambda i, j: (i, 0)),
                # Partner rows: tile index (i + B/TM) mod (2B/TM) (TM divides B,
                # so the partner tile is contiguous and never splits).
                pl.BlockSpec((row_tile, dim),
                             lambda i, j: ((i + half_tiles) % n_row_tiles, 0)),
                # Streamed column tile of the RHS (never resident as a whole).
                pl.BlockSpec((col_tile, dim), lambda i, j: (j, 0)),
            ],
            out_specs=pl.BlockSpec((row_tile, 1), lambda i, j: (i, 0)),
            scratch_shapes=[pltpu.VMEM((row_tile, 1), jnp.float32),   # running max
                            pltpu.VMEM((row_tile, 1), jnp.float32)],  # running sum
        ),
        compiler_params=pltpu.CompilerParams(
            dimension_semantics=("parallel", "arbitrary"),
            vmem_limit_bytes=vmem_bytes,
        ),
    )(rep_mm, rep_mm, rep_mm)

    return jnp.sum(per_row) / n_rows


def _ntxent_reference(z_i, z_j, temperature=0.5, use_cosine_similarity=True):
    # Pure-JAX f32 reference mirroring the PyTorch module (no diagonal mask applied).
    if use_cosine_similarity:
        z_i = z_i / jnp.maximum(jnp.linalg.norm(z_i, axis=1, keepdims=True), 1e-12)
        z_j = z_j / jnp.maximum(jnp.linalg.norm(z_j, axis=1, keepdims=True), 1e-12)
    b = z_i.shape[0]
    rep = jnp.concatenate([z_i, z_j], axis=0)
    sim = (rep @ rep.T) / temperature
    labels = jnp.concatenate([jnp.arange(b, 2 * b), jnp.arange(0, b)])
    lse = jax.scipy.special.logsumexp(sim, axis=1)
    pos = sim[jnp.arange(2 * b), labels]
    return jnp.mean(lse - pos)


if __name__ == "__main__":
    # batch=96, dim=128 -> 2B = 192: row tile 32 (6 row tiles, exercises the
    # parallel row axis and the partner wrap-around) and column tile 64 (3 column
    # tiles, exercises the online logsumexp accumulation).
    batch, dim = 96, 128

    key = jax.random.PRNGKey(0)
    k1, k2 = jax.random.split(key)
    z_i = jax.random.normal(k1, (batch, dim), dtype=jnp.float32)
    z_j = jax.random.normal(k2, (batch, dim), dtype=jnp.float32)

    loss = jax.block_until_ready(ntxent_loss(z_i, z_j))
    ref = _ntxent_reference(z_i, z_j)

    assert bool(jnp.isfinite(loss))
    # bf16 MXU operands vs f32 reference: allow a small absolute tolerance.
    assert bool(jnp.abs(loss - ref) < 5e-2), (float(loss), float(ref))
    print("KERNEL_OK")
</pallas_src>

<mosaic_0001>
module attributes {stable_mosaic.version = 11 : i64} {
  func.func @_l2_normalize_kernel(%arg0: i32, %arg1: memref<64x128xf32, #tpu.memory_space<vmem>>, %arg2: memref<64x128xbf16, #tpu.memory_space<vmem>>) attributes {dimension_semantics = [#tpu.dimension_semantics<parallel>], iteration_bounds = array<i64: 3>, scalar_prefetch = 0 : i64, scratch_operands = 0 : i64, tpu.core_type = #tpu.core_type<tc>, window_params = [{transform_indices = @transform_0, window_bounds = array<i64: 64, 128>}, {transform_indices = @transform_1, window_bounds = array<i64: 64, 128>}]} {
    %c0 = arith.constant 0 : index
    %c0_0 = arith.constant 0 : index
    %0 = vector.load %arg1[%c0, %c0_0] : memref<64x128xf32, #tpu.memory_space<vmem>>, vector<64x128xf32>
    %1 = arith.mulf %0, %0 : vector<64x128xf32>
    %cst = arith.constant dense<0.000000e+00> : vector<64xf32>
    %2 = vector.multi_reduction <add>, %1, %cst [1] : vector<64x128xf32> to vector<64xf32>
    %3 = vector.shape_cast %2 : vector<64xf32> to vector<64x1xf32>
    %cst_1 = arith.constant 1.000000e-24 : f32
    %4 = vector.broadcast %cst_1 : f32 to vector<64x1xf32>
    %5 = arith.maximumf %3, %4 : vector<64x1xf32>
    %6 = math.rsqrt %5 : vector<64x1xf32>
    %7 = vector.broadcast %6 : vector<64x1xf32> to vector<64x128xf32>
    %8 = arith.mulf %0, %7 : vector<64x128xf32>
    %9 = arith.truncf %8 : vector<64x128xf32> to vector<64x128xbf16>
    %c0_2 = arith.constant 0 : index
    %c0_3 = arith.constant 0 : index
    %10 = vector.load %arg2[%c0_2, %c0_3] : memref<64x128xbf16, #tpu.memory_space<vmem>>, vector<64x128xbf16>
    tpu.vector_store %arg2[%c0_2, %c0_3], %9 {strides = array<i32>} : memref<64x128xbf16, #tpu.memory_space<vmem>>, vector<64x128xbf16>,
    return
  }
  func.func @transform_0(%arg0: i32) -> (i32, i32) {
    %c0_i32 = arith.constant 0 : i32
    %c0_i32_0 = arith.constant 0 : i32
    return %arg0, %c0_i32 : i32, i32
  }
  func.func @transform_1(%arg0: i32) -> (i32, i32) {
    %c0_i32 = arith.constant 0 : i32
    %c0_i32_0 = arith.constant 0 : i32
    return %arg0, %c0_i32 : i32, i32
  }
}

</mosaic_0001>

<llo_original>
// kernel: tpu_custom_call.1
$region0: #{tpu_custom_call.1}
  #allocation0 [shape = 'u32[]', space=smem, size = 0x4, offset = 0x4, fixed_abs, tag = 'smem constant byte address 0x4 - core index']
  #allocation1 [shape = 'u32[144,128]{1,0:T(1,128)}', space=vmem, size = 0x12000, scoped, tag = 'internal scratch']
  %s0 = inlined_call_operand.hbm [shape: f32[192,128], index: 0, kind: input, shape index: {}]
  %s1 = inlined_call_operand.hbm [shape: bf16[192,128], index: 1, kind: output, shape index: {}]
  %s2 = sld [smem:[#allocation0]]
  $region41: #{tpu_custom_call.1} parent=0
    _
  %s4 = ssub.s32 1, %s2
  %s5 = scalar_select 0, %s4, %s2
  $region1: #{tpu_custom_call.1} parent=0
    #allocation2 [shape = 'u8[65536]{0}', space=vmem, size = 0x10000, scoped, tag = 'input window, operand 0']
    #allocation3 [shape = 's32[2]{0}', space=sflag, size = 0x8, scoped, tag = 'scoped memory for tpu_custom_call.1']
    #allocation4 [shape = 's32[2]{0}', space=sflag, size = 0x8, scoped, tag = 'scoped memory for tpu_custom_call.1']
    #allocation5 [shape = 'u8[32768]{0}', space=vmem, size = 0x8000, scoped, tag = 'output window, operand 0']
    %6 = vsyncpa [#allocation3], 0
    %s7 = scalar_lea.sflag [#allocation3], 1
    %8 = vsyncpa %s7, 0
    %9 = vsyncpa [#allocation4], 0
    %s10 = scalar_lea.sflag [#allocation4], 1
    %11 = vsyncpa %s10, 0
    loop: start=0, step=1, limit=5
    $region2: #{tpu_custom_call.1} parent=1 // loop_pre_header
      _
    $region3: #{tpu_custom_call.1} parent=1 // loop_header
      %s13 = sphi 0, %s17
      %p14 = scmp.ge.s32.totalorder %s13, 5
      %s23 = sphi 0, %s25
      %s26 = sphi 0, %s23
      %s27 = sphi 0, %s26
      %s43 = sphi 0, %s27
      %s49 = sphi 0, %s51
      %s52 = sphi 0, %s49
      %s53 = sphi 0, %s52
      %s69 = sphi 0, %s53
    $region4: #{tpu_custom_call.1} parent=1 // loop_header_branch
      %16 = sbr.rel (%p14) target = $region8
    $region5: #{tpu_custom_call.1} parent=1 // loop_body
      %s18 = ssub.s32 %s13, 1
      %s19 = ssub.s32 %s13, 2
      %s20 = sadd.s32 %s13, 1
      %s21 = ssub.s32 %s13, %s20
      %p22 = scmp.eq.s32.totalorder %s21, 0
      %s24 = sadd.s32 %s23, 1
      %s25 = scalar_select %p22, %s23, %s24
      %p28 = pneg %p22
      %p29 = scmp.eq.s32.totalorder %s13, 2
      %p30 = por %p28, %p29
      %p31 = scmp.ne.s32.totalorder %s23, %s26
      %p32 = scmp.eq.s32.totalorder %s13, 0
      %p33 = por %p31, %p32
      %p34 = scmp.ne.s32.totalorder %s23, %s26
      %p35 = scmp.eq.s32.totalorder %s18, 2
      %p36 = por %p34, %p35
      %p37 = scmp.ne.s32.totalorder %s26, %s27
      %p38 = scmp.eq.s32.totalorder %s18, 0
      %p39 = por %p37, %p38
      %p40 = scmp.ne.s32.totalorder %s26, %s27
      %p41 = scmp.eq.s32.totalorder %s19, 2
      %p42 = por %p40, %p41
      %p44 = scmp.ne.s32.totalorder %s27, %s43
      %p45 = scmp.eq.s32.totalorder %s19, 0
      %p46 = por %p44, %p45
      %s47 = ssub.s32 %s13, %s20
      %p48 = scmp.eq.s32.totalorder %s47, 0
      %s50 = sadd.s32 %s49, 1
      %s51 = scalar_select %p48, %s49, %s50
      %p54 = pneg %p48
      %p55 = scmp.eq.s32.totalorder %s13, 2
      %p56 = por %p54, %p55
      %p57 = scmp.ne.s32.totalorder %s49, %s52
      %p58 = scmp.eq.s32.totalorder %s13, 0
      %p59 = por %p57, %p58
      %p60 = scmp.ne.s32.totalorder %s49, %s52
      %p61 = scmp.eq.s32.totalorder %s18, 2
      %p62 = por %p60, %p61
      %p63 = scmp.ne.s32.totalorder %s52, %s53
      %p64 = scmp.eq.s32.totalorder %s18, 0
      %p65 = por %p63, %p64
      %p66 = scmp.ne.s32.totalorder %s52, %s53
      %p67 = scmp.eq.s32.totalorder %s19, 2
      %p68 = por %p66, %p67
      %p70 = scmp.ne.s32.totalorder %s53, %s69
      %p71 = scmp.eq.s32.totalorder %s19, 0
      %p72 = por %p70, %p71
      %p73 = scmp.le.s32.totalorder 1, %s13
      %p74 = scmp.lt.s32.totalorder %s13, 4
      %p75 = pnand %p73, %p74
      %p76 = pneg %p75
      // Predicated region
      $region9: #{tpu_custom_call.1} parent=5 // pred_check
        _
      $region10: #{tpu_custom_call.1} parent=5 // pred_check_branch
        %78 = sbr.rel (%p75) target = $region12
      $region11: #{tpu_custom_call.1} parent=5 // pred_region
        %s79 = ssub.s32 %s13, 1
      $region12: #{tpu_custom_call.1} parent=5 // pred_fallthru
        _
      %p80 = scmp.lt.s32.totalorder %s13, 3
      // Predicated region
      $region13: #{tpu_custom_call.1} parent=5 // pred_check
        %p81 = pneg %p80
      $region14: #{tpu_custom_call.1} parent=5 // pred_check_branch
        %83 = sbr.rel (%p81) target = $region16
      $region15: #{tpu_custom_call.1} parent=5 // pred_region
        // Predicated region
        $region17: #{tpu_custom_call.1} parent=15 // pred_check
          %p84 = pneg %p33
        $region18: #{tpu_custom_call.1} parent=15 // pred_check_branch
          %86 = sbr.rel (%p84) target = $region20
        $region19: #{tpu_custom_call.1} parent=15 // pred_region
          %s87 = sand.u32 %s23, 1
          %s88 = scalar_lea.sflag [#allocation3], %s87
          %s89 = sand.u32 %s23, 1
          %s90 = smul.addr %s89, 64
          %s91 = scalar_lea.vmem [#allocation2], %s90
          %s92 = smul.u32 8, %s13
          %s94 = ssub.s32 1024, 1024
          %95 = vsyncadd %s88, %s94
          %s96 = smul.addr %s92, 128
          %s97 = scalar_lea.hbm %s0, %s96
          %s98 = sshll.u32 %s91, 4
          %s99 = int_to_ptr.vmem [resolvable:$true] %s98
          %104 = dma.hbm_to_vmem [thread:$0]  %s97, 1024, %s99, %s88, 128, 128, 8
        $region20: #{tpu_custom_call.1} parent=15 // pred_fallthru
          _
      $region16: #{tpu_custom_call.1} parent=5 // pred_fallthru
        _
      %p105 = scmp.le.s32.totalorder 1, %s13
      %p106 = scmp.lt.s32.totalorder %s13, 4
      %p107 = pnand %p105, %p106
      %p108 = pneg %p107
      // Predicated region
      $region21: #{tpu_custom_call.1} parent=5 // pred_check
        _
      $region22: #{tpu_custom_call.1} parent=5 // pred_check_branch
        %110 = sbr.rel (%p107) target = $region24
      $region23: #{tpu_custom_call.1} parent=5 // pred_region
        %s111 = ssub.s32 %s13, 1
        %s112 = sand.u32 %s26, 1
        %s113 = scalar_lea.sflag [#allocation3], %s112
        %s114 = sand.u32 %s26, 1
        %s115 = smul.addr %s114, 64
        %s116 = scalar_lea.vmem [#allocation2], %s115
        // Predicated region
        $region25: #{tpu_custom_call.1} parent=23 // pred_check
          %p117 = pneg %p39
        $region26: #{tpu_custom_call.1} parent=23 // pred_check_branch
          %119 = sbr.rel (%p117) target = $region28
        $region27: #{tpu_custom_call.1} parent=23 // pred_region
          %120 = dma.done %s113, 1024
        $region28: #{tpu_custom_call.1} parent=23 // pred_fallthru
          _
        %s121 = sand.u32 %s26, 1
        %s122 = scalar_lea.sflag [#allocation3], %s121
        %s123 = sand.u32 %s26, 1
        %s124 = smul.addr %s123, 64
        %s125 = scalar_lea.vmem [#allocation2], %s124
        %p126 = pneg %p39
        %p127 = pneg %p36
        %p128 = pneg %p65
        %p129 = pneg %p62
        %s130 = sand.u32 %s52, 1
        %s131 = scalar_lea.sflag [#allocation4], %s130
        %s132 = sand.u32 %s52, 1
        %s133 = smul.addr %s132, 32
        %s134 = scalar_lea.vmem [#allocation5], %s133
        %s135 = smul.u32 8, %s18
        %s136 = smul.u32 8, %s18
        %v137 = vld [vmem:[%s116] sm:$0xff]
        %v138 = vld [vmem:[%s116 + $0x8] sm:$0xff]
        %v139 = vld [vmem:[%s116 + $0x10] sm:$0xff]
        %v140 = vld [vmem:[%s116 + $0x18] sm:$0xff]
        %v141 = vld [vmem:[%s116 + $0x20] sm:$0xff]
        %v142 = vld [vmem:[%s116 + $0x28] sm:$0xff]
        %v143 = vld [vmem:[%s116 + $0x30] sm:$0xff]
        %v144 = vld [vmem:[%s116 + $0x38] sm:$0xff]
        %v145 = vmul.f32 %v137, %v137
        %v146 = vmul.f32 %v138, %v138
        %v147 = vmul.f32 %v139, %v139
        %v148 = vmul.f32 %v140, %v140
        %v149 = vmul.f32 %v141, %v141
        %v150 = vmul.f32 %v142, %v142
        %v151 = vmul.f32 %v143, %v143
        %v152 = vmul.f32 %v144, %v144
        %153 = vadd.xlane.f32.xlu0 %v145
        %v154 = vpop.xlane.xlu0 %153
        %155 = vadd.xlane.f32.xlu0 %v146
        %v156 = vpop.xlane.xlu0 %155
        %157 = vadd.xlane.f32.xlu0 %v147
        %v158 = vpop.xlane.xlu0 %157
        %159 = vadd.xlane.f32.xlu0 %v148
        %v160 = vpop.xlane.xlu0 %159
        %161 = vadd.xlane.f32.xlu0 %v149
        %v162 = vpop.xlane.xlu0 %161
        %163 = vadd.xlane.f32.xlu0 %v150
        %v164 = vpop.xlane.xlu0 %163
        %165 = vadd.xlane.f32.xlu0 %v151
        %v166 = vpop.xlane.xlu0 %165
        %167 = vadd.xlane.f32.xlu0 %v152
        %v168 = vpop.xlane.xlu0 %167
        %v169 = vmax.f32 %v154, 1e-24
        %v170 = vmax.f32 %v156, 1e-24
        %v171 = vmax.f32 %v158, 1e-24
        %v172 = vmax.f32 %v160, 1e-24
        %v173 = vmax.f32 %v162, 1e-24
        %v174 = vmax.f32 %v164, 1e-24
        %v175 = vmax.f32 %v166, 1e-24
        %v176 = vmax.f32 %v168, 1e-24
        %v177 = vrsqrt.pop %v169
        %v178 = vrsqrt.pop %v170
        %v179 = vrsqrt.pop %v171
        %v180 = vrsqrt.pop %v172
        %v181 = vrsqrt.pop %v173
        %v182 = vrsqrt.pop %v174
        %v183 = vrsqrt.pop %v175
        %v184 = vrsqrt.pop %v176
        %v185 = vmul.f32 %v137, %v177
        %v186 = vmul.f32 %v138, %v178
        %v187 = vmul.f32 %v139, %v179
        %v188 = vmul.f32 %v140, %v180
        %v189 = vmul.f32 %v141, %v181
        %v190 = vmul.f32 %v142, %v182
        %v191 = vmul.f32 %v143, %v183
        %v192 = vmul.f32 %v144, %v184
        %v193 = vpack.c.bf16 %v186, %v185
        %v194 = vpack.c.bf16 %v188, %v187
        %v195 = vpack.c.bf16 %v190, %v189
        %v196 = vpack.c.bf16 %v192, %v191
        %v201 = vunpack.c.l.b16 %v193
        %v202 = vunpack.c.h.b16 %v193
        %v203 = vunpack.c.l.b16 %v194
        %v204 = vunpack.c.h.b16 %v194
        %v205 = vunpack.c.l.b16 %v195
        %v206 = vunpack.c.h.b16 %v195
        %v207 = vunpack.c.l.b16 %v196
        %v208 = vunpack.c.h.b16 %v196
        %v209 = vpack.c.b16 %v201, %v201
        %v210 = vpack.c.b16 %v202, %v202
        %v211 = vpack.c.b16 %v203, %v203
        %v212 = vpack.c.b16 %v204, %v204
        %v213 = vpack.c.b16 %v205, %v205
        %v214 = vpack.c.b16 %v206, %v206
        %v215 = vpack.c.b16 %v207, %v207
        %v216 = vpack.c.b16 %v208, %v208
        %225 = vst [vmem:[%s134] sm:$0xf] %v209
        %226 = vst [vmem:[%s134 + $0x4] sm:$0xf] %v210
        %227 = vst [vmem:[%s134 + $0x8] sm:$0xf] %v211
        %228 = vst [vmem:[%s134 + $0xc] sm:$0xf] %v212
        %229 = vst [vmem:[%s134 + $0x10] sm:$0xf] %v213
        %230 = vst [vmem:[%s134 + $0x14] sm:$0xf] %v214
        %231 = vst [vmem:[%s134 + $0x18] sm:$0xf] %v215
        %232 = vst [vmem:[%s134 + $0x1c] sm:$0xf] %v216
        %s233 = sand.u32 %s52, 1
        %s234 = scalar_lea.sflag [#allocation4], %s233
        %s235 = sand.u32 %s52, 1
        %s236 = smul.addr %s235, 32
        %s237 = scalar_lea.vmem [#allocation5], %s236
        // Predicated region
        $region29: #{tpu_custom_call.1} parent=23 // pred_check
          %p238 = pneg %p62
        $region30: #{tpu_custom_call.1} parent=23 // pred_check_branch
          %240 = sbr.rel (%p238) target = $region32
        $region31: #{tpu_custom_call.1} parent=23 // pred_region
          %s241 = smul.u32 8, %s18
          %s243 = ssub.s32 512, 512
          %244 = vsyncadd %s234, %s243
          %s245 = smul.addr %s241, 64
          %s246 = scalar_lea.hbm %s1, %s245
          %s247 = sshll.u32 %s237, 4
          %s248 = int_to_ptr.vmem [resolvable:$true] %s247
          %253 = dma.vmem_to_hbm [thread:$0]  %s248, 512, %s246, %s234, 64, 64, 4
        $region32: #{tpu_custom_call.1} parent=23 // pred_fallthru
          _
      $region24: #{tpu_custom_call.1} parent=5 // pred_fallthru
        _
      %p254 = scmp.le.s32.totalorder 2, %s13
      // Predicated region
      $region33: #{tpu_custom_call.1} parent=5 // pred_check
        %p255 = pneg %p254
      $region34: #{tpu_custom_call.1} parent=5 // pred_check_branch
        %257 = sbr.rel (%p255) target = $region36
      $region35: #{tpu_custom_call.1} parent=5 // pred_region
        %s258 = ssub.s32 %s13, 2
        // Predicated region
        $region37: #{tpu_custom_call.1} parent=35 // pred_check
          %p259 = pneg %p68
        $region38: #{tpu_custom_call.1} parent=35 // pred_check_branch
          %261 = sbr.rel (%p259) target = $region40
        $region39: #{tpu_custom_call.1} parent=35 // pred_region
          %s262 = sand.u32 %s53, 1
          %s263 = scalar_lea.sflag [#allocation4], %s262
          %s264 = sand.u32 %s53, 1
          %s265 = smul.addr %s264, 32
          %s266 = scalar_lea.vmem [#allocation5], %s265
          %267 = dma.done %s263, 512
        $region40: #{tpu_custom_call.1} parent=35 // pred_fallthru
          _
      $region36: #{tpu_custom_call.1} parent=5 // pred_fallthru
        _
    $region6: #{tpu_custom_call.1} parent=1 // loop_footer
      %s17 = sadd.s32 1, %s13
    $region7: #{tpu_custom_call.1} parent=1 // loop_footer_branch
      %12 = sbr.rel target = $region3
    $region8: #{tpu_custom_call.1} parent=1 // loop_exit
      _
    %268 = vsyncpa [#allocation3], 1
    %s269 = scalar_lea.sflag [#allocation3], 1
    %270 = vsyncpa %s269, 1
    %271 = vsyncpa [#allocation4], 1
    %s272 = scalar_lea.sflag [#allocation4], 1
    %273 = vsyncpa %s272, 1

</llo_original>
